<compile_context>
chip_gen: v6e
topology: v6e:2x2x1
jax: 0.10.0
libtpu: 0.0.40
codegen_flags: <defaults>
</compile_context>

<pallas_src>
import functools
import math

import jax
import jax.numpy as jnp
from jax.experimental import pallas as pl
from jax.experimental.pallas import tpu as pltpu


# ----------------------------- Pallas kernel ------------------------------ #
def _label_smoothing_kernel(target_ref, logits_ref, psum_ref, *,
                            num_classes, smoothing, std, mode,
                            n_valid_rows, mask_rows):
    x = logits_ref[...].astype(jnp.float32)                    # (tile_n, C)
    t = target_ref[...]                                        # (tile_n, 1) i32
    tile_n = x.shape[0]
    cls = jax.lax.broadcasted_iota(jnp.int32, x.shape, 1)      # class indices

    # log-softmax statistics along classes (dim=1)
    m = jnp.max(x, axis=-1, keepdims=True)                     # (tile_n, 1)
    sum_exp = jnp.sum(jnp.exp(x - m), axis=-1, keepdims=True)  # (tile_n, 1)
    lse = m + jnp.log(sum_exp)                                 # (tile_n, 1)

    if mode == "origin":
        confidence = 1.0 - smoothing
        fill = smoothing / (num_classes - 1)
        # sum_c t*log(t) per row is a compile-time constant (0*log0 := 0).
        const_tlogt = 0.0
        if confidence > 0.0:
            const_tlogt += confidence * math.log(confidence)
        if fill > 0.0:
            const_tlogt += (num_classes - 1) * fill * math.log(fill)

        # single fused weighted reduction: the smoothed weights sum to 1, so
        #   sum_c w * logp = sum_c w * x - lse
        w = jnp.where(cls == t, jnp.float32(confidence), jnp.float32(fill))
        tw = jnp.sum(x * w, axis=-1, keepdims=True)             # (tile_n, 1)
        row_kl = const_tlogt - (tw - lse)

    elif mode == "normal_dis":
        # torch.linspace(0, C, steps=C)  ->  k * C / (C - 1)
        xs = cls.astype(jnp.float32) * (num_classes / (num_classes - 1.0))
        z = (xs - t.astype(jnp.float32)) * (1.0 / std)
        nhz2 = -0.5 * z * z                       # log-unnormalized gaussian
        e = jnp.exp(nhz2)
        sum_e = jnp.sum(e, axis=-1, keepdims=True)              # (tile_n, 1)
        # sum_c td*(log td - logp)
        #   = [sum_c e*(nhz2 - x) + lse*sum_e] / sum_e - log(sum_e)
        # (logp is never materialized; saves a full (tile_n, C) temporary)
        num = jnp.sum(e * (nhz2 - x), axis=-1, keepdims=True) + lse * sum_e
        row_kl = num * pl.reciprocal(sum_e, approx=True) - jnp.log(sum_e)
    else:
        raise ValueError(f"unknown ls_mode: {mode}")

    if mask_rows:
        # zero-out padded rows (ragged N handled by wrapper-side padding)
        row = (pl.program_id(0) * tile_n
               + jax.lax.broadcasted_iota(jnp.int32, (tile_n, 1), 0))
        row_kl = jnp.where(row < n_valid_rows, row_kl, 0.0)

    # one partial sum per grid step, splatted into a lane-dense (1,8,128) block
    partial = jnp.sum(row_kl, axis=0, keepdims=True)            # (1, 1)
    psum_ref[...] = jnp.broadcast_to(partial.reshape(1, 1, 1), psum_ref.shape)


# ------------------------------ tile picking ------------------------------- #
def _round_up(x, m):
    return ((x + m - 1) // m) * m


def _vmem_capacity_bytes():
    """Per-core VMEM capacity; conservative 64 MiB (v7x) fallback."""
    try:
        cap = getattr(pltpu.get_tpu_info(), "vmem_capacity_bytes", None)
        if cap:
            return int(cap)
    except Exception:
        pass
    return 64 << 20


def _pick_tile_n(N, C, vmem_cap_bytes):
    """Batch-tile size from the f32 working-set budget (kernel computes in f32)."""
    budget = min(vmem_cap_bytes // 10, 12 << 20)   # ~6.4 MiB on v7x, 12 MiB on v5e/v6e
    rows = max(8, (budget // (C * 4)) // 8 * 8)
    n8 = _round_up(N, 8)
    if rows >= n8:
        # whole batch fits in one tile; still split in two when possible so the
        # "parallel" grid axis has work to shard across v7x's 2 TensorCores.
        if n8 >= 16:
            return _round_up((n8 + 1) // 2, 8)
        return n8
    # TODO(synk): for vocab-scale C (rows pinned at 8) add a class-axis grid.
    return min(rows, n8)


# ------------------------------- wrapper ----------------------------------- #
def label_smoothing_loss(logits, target, *, smoothing, std, mode, tile_n=None):
    N, C = logits.shape
    vmem_cap = _vmem_capacity_bytes()
    if tile_n is None:
        tile_n = _pick_tile_n(N, C, vmem_cap)
    tile_n = max(8, (tile_n // 8) * 8)
    grid_n = -(-N // tile_n)                     # cdiv
    n_pad = grid_n * tile_n

    target2d = target.reshape(N, 1).astype(jnp.int32)
    if n_pad != N:
        logits = jnp.pad(logits, ((0, n_pad - N), (0, 0)))
        target2d = jnp.pad(target2d, ((0, n_pad - N), (0, 0)))

    # VMEM limit derived from the actual footprint:
    #   2x double-buffered input tile (input dtype) + ~5 live f32 working tiles.
    itemsize = jnp.dtype(logits.dtype).itemsize
    est = 2 * tile_n * C * itemsize + 5 * tile_n * C * 4 + (2 << 20)
    vmem_limit = int(min(vmem_cap, max(est, 16 << 20)))

    kernel = functools.partial(
        _label_smoothing_kernel,
        num_classes=C, smoothing=smoothing, std=std, mode=mode,
        n_valid_rows=N, mask_rows=(n_pad != N))

    partials = pl.pallas_call(
        kernel,
        out_shape=jax.ShapeDtypeStruct((grid_n, 8, 128), jnp.float32),
        grid=(grid_n,),
        in_specs=[
            pl.BlockSpec((tile_n, 1), lambda i: (i, 0)),   # target indices
            pl.BlockSpec((tile_n, C), lambda i: (i, 0)),   # logits tile
        ],
        out_specs=pl.BlockSpec((1, 8, 128), lambda i: (i, 0, 0)),
        compiler_params=pltpu.CompilerParams(
            dimension_semantics=(pltpu.PARALLEL,),   # disjoint output blocks
            vmem_limit_bytes=vmem_limit,
        ),
    )(target2d, logits)

    # reduction='mean' over all N*C elements; scale applied exactly once.
    return jnp.sum(partials[:, 0, 0]) * jnp.float32(1.0 / (N * C))


# --------------------------- pure-JAX reference ---------------------------- #
def _reference_loss(logits, target, *, smoothing, std, mode):
    N, C = logits.shape
    logp = jax.nn.log_softmax(logits.astype(jnp.float32), axis=1)
    if mode == "origin":
        td = jnp.full((N, C), smoothing / (C - 1), jnp.float32)
        td = td.at[jnp.arange(N), target].set(1.0 - smoothing)
    else:
        xs = jnp.arange(C, dtype=jnp.float32) * (C / (C - 1))
        z = (xs[None, :] - target[:, None].astype(jnp.float32)) / std
        e = jnp.exp(-0.5 * z * z)
        td = e / jnp.sum(e, axis=1, keepdims=True)
    kl = jnp.where(td > 0, td * jnp.log(jnp.maximum(td, 1e-38)), 0.0) - td * logp
    return jnp.mean(kl)


# --------------------------------- main ------------------------------------ #
if __name__ == "__main__":
    # synthetic "config": smoothing, std, target_class (=C), ls_mode
    SMOOTHING = 0.1
    STD = 2.0
    N, C = 16, 16          # batch, num_classes (target_class == C)

    key = jax.random.PRNGKey(0)
    k1, k2 = jax.random.split(key)
    logits = jax.random.normal(k1, (N, C), dtype=jnp.float32)
    target = jax.random.randint(k2, (N,), 0, C, dtype=jnp.int32)

    # normal_dis uses the approximate EUP reciprocal for the per-row divide,
    # so its self-check tolerance is looser than origin's (exact algebra).
    tolerances = {"origin": (1e-5, 1e-5), "normal_dis": (2e-3, 2e-2)}

    ok = True
    for mode in ("origin", "normal_dis"):
        loss = label_smoothing_loss(logits, target,
                                    smoothing=SMOOTHING, std=STD, mode=mode)
        loss = jax.block_until_ready(loss)
        ref = _reference_loss(logits, target,
                              smoothing=SMOOTHING, std=STD, mode=mode)
        atol, rtol = tolerances[mode]
        if not jnp.allclose(loss, ref, atol=atol, rtol=rtol):
            ok = False
            print(f"MISMATCH mode={mode}: kernel={loss} ref={ref}")

    if ok:
        print("KERNEL_OK")
</pallas_src>

<mosaic_0001>
module attributes {stable_mosaic.version = 11 : i64} {
  func.func @_label_smoothing_kernel(%arg0: i32, %arg1: memref<8x1xi32, #tpu.memory_space<vmem>>, %arg2: memref<8x16xf32, #tpu.memory_space<vmem>>, %arg3: memref<1x8x128xf32, #tpu.memory_space<vmem>>) attributes {dimension_semantics = [#tpu.dimension_semantics<parallel>], iteration_bounds = array<i64: 2>, scalar_prefetch = 0 : i64, scratch_operands = 0 : i64, tpu.core_type = #tpu.core_type<tc>, window_params = [{transform_indices = @transform_0, window_bounds = array<i64: 8, 1>}, {transform_indices = @transform_1, window_bounds = array<i64: 8, 16>}, {transform_indices = @transform_2, window_bounds = array<i64: 1, 8, 128>}]} {
    %c0 = arith.constant 0 : index
    %c0_0 = arith.constant 0 : index
    %0 = vector.load %arg2[%c0, %c0_0] : memref<8x16xf32, #tpu.memory_space<vmem>>, vector<8x16xf32>
    %c0_1 = arith.constant 0 : index
    %c0_2 = arith.constant 0 : index
    %1 = vector.load %arg1[%c0_1, %c0_2] : memref<8x1xi32, #tpu.memory_space<vmem>>, vector<8x1xi32>
    %2 = tpu.iota {dimensions = array<i32: 1>} : vector<8x16xi32>
    %cst = arith.constant dense<0xFF800000> : vector<8xf32>
    %3 = vector.multi_reduction <maximumf>, %0, %cst [1] : vector<8x16xf32> to vector<8xf32>
    %4 = vector.shape_cast %3 : vector<8xf32> to vector<8x1xf32>
    %5 = vector.broadcast %4 : vector<8x1xf32> to vector<8x16xf32>
    %6 = arith.subf %0, %5 : vector<8x16xf32>
    %7 = math.exp %6 : vector<8x16xf32>
    %cst_3 = arith.constant dense<0.000000e+00> : vector<8xf32>
    %8 = vector.multi_reduction <add>, %7, %cst_3 [1] : vector<8x16xf32> to vector<8xf32>
    %9 = vector.shape_cast %8 : vector<8xf32> to vector<8x1xf32>
    %10 = math.log %9 : vector<8x1xf32>
    %11 = arith.addf %4, %10 : vector<8x1xf32>
    %12 = vector.broadcast %1 : vector<8x1xi32> to vector<8x16xi32>
    %13 = arith.cmpi eq, %2, %12 : vector<8x16xi32>
    %cst_4 = arith.constant 0.899999976 : f32
    %cst_5 = arith.constant 0.00666666683 : f32
    %14 = vector.broadcast %cst_4 : f32 to vector<8x16xf32>
    %15 = vector.broadcast %cst_5 : f32 to vector<8x16xf32>
    %16 = arith.select %13, %14, %15 : vector<8x16xi1>, vector<8x16xf32>
    %17 = arith.mulf %0, %16 : vector<8x16xf32>
    %cst_6 = arith.constant dense<0.000000e+00> : vector<8xf32>
    %18 = vector.multi_reduction <add>, %17, %cst_6 [1] : vector<8x16xf32> to vector<8xf32>
    %19 = vector.shape_cast %18 : vector<8xf32> to vector<8x1xf32>
    %20 = arith.subf %19, %11 : vector<8x1xf32>
    %cst_7 = arith.constant -5.958880e-01 : f32
    %21 = vector.broadcast %cst_7 : f32 to vector<8x1xf32>
    %22 = arith.subf %21, %20 : vector<8x1xf32>
    %cst_8 = arith.constant dense<0.000000e+00> : vector<1xf32>
    %23 = vector.multi_reduction <add>, %22, %cst_8 [0] : vector<8x1xf32> to vector<1xf32>
    %24 = vector.shape_cast %23 : vector<1xf32> to vector<1x1xf32>
    %25 = vector.shape_cast %24 : vector<1x1xf32> to vector<1x1x1xf32>
    %26 = vector.shape_cast %25 : vector<1x1x1xf32> to vector<1x1x1xf32>
    %27 = vector.broadcast %26 : vector<1x1x1xf32> to vector<1x8x128xf32>
    %c0_9 = arith.constant 0 : index
    %c0_10 = arith.constant 0 : index
    %c0_11 = arith.constant 0 : index
    %28 = vector.load %arg3[%c0_9, %c0_10, %c0_11] : memref<1x8x128xf32, #tpu.memory_space<vmem>>, vector<1x8x128xf32>
    tpu.vector_store %arg3[%c0_9, %c0_10, %c0_11], %27 {strides = array<i32>} : memref<1x8x128xf32, #tpu.memory_space<vmem>>, vector<1x8x128xf32>,
    return
  }
  func.func @transform_0(%arg0: i32) -> (i32, i32) {
    %c0_i32 = arith.constant 0 : i32
    %c0_i32_0 = arith.constant 0 : i32
    return %arg0, %c0_i32 : i32, i32
  }
  func.func @transform_1(%arg0: i32) -> (i32, i32) {
    %c0_i32 = arith.constant 0 : i32
    %c0_i32_0 = arith.constant 0 : i32
    return %arg0, %c0_i32 : i32, i32
  }
  func.func @transform_2(%arg0: i32) -> (i32, i32, i32) {
    %c0_i32 = arith.constant 0 : i32
    %c0_i32_0 = arith.constant 0 : i32
    %c0_i32_1 = arith.constant 0 : i32
    return %arg0, %c0_i32, %c0_i32_0 : i32, i32, i32
  }
}

</mosaic_0001>

<llo_original>
// kernel: tpu_custom_call.1
$region0: #{tpu_custom_call.1}
  #allocation0 [shape = 'u32[]', space=smem, size = 0x4, offset = 0x4, fixed_abs, tag = 'smem constant byte address 0x4 - core index']
  #allocation1 [shape = 'u32[144,128]{1,0:T(1,128)}', space=vmem, size = 0x12000, scoped, tag = 'internal scratch']
  %s0 = inlined_call_operand.vmem [shape: s32[16,1], index: 0, kind: input, shape index: {}]
  %s1 = inlined_call_operand.vmem [shape: f32[16,16], index: 1, kind: input, shape index: {}]
  %s2 = inlined_call_operand.hbm [shape: f32[2,8,128], index: 2, kind: output, shape index: {}]
  %s3 = sld [smem:[#allocation0]]
  $region41: #{tpu_custom_call.1} parent=0
    _
  %s5 = ssub.s32 1, %s3
  %s6 = scalar_select 0, %s5, %s3
  $region1: #{tpu_custom_call.1} parent=0
    #allocation2 [shape = 'u8[8192]{0}', space=vmem, size = 0x2000, scoped, tag = 'output window, operand 0']
    #allocation3 [shape = 's32[2]{0}', space=sflag, size = 0x8, scoped, tag = 'scoped memory for tpu_custom_call.1']
    %7 = vsyncpa [#allocation3], 0
    %s8 = scalar_lea.sflag [#allocation3], 1
    %9 = vsyncpa %s8, 0
    loop: start=0, step=1, limit=4
    $region2: #{tpu_custom_call.1} parent=1 // loop_pre_header
      _
    $region3: #{tpu_custom_call.1} parent=1 // loop_header
      %s11 = sphi 0, %s15
      %p12 = scmp.ge.s32.totalorder %s11, 4
      %s21 = sphi 0, %s23
      %s24 = sphi 0, %s21
      %s25 = sphi 0, %s24
      %s41 = sphi 0, %s25
      %s47 = sphi 0, %s49
      %s50 = sphi 0, %s47
      %s51 = sphi 0, %s50
      %s67 = sphi 0, %s51
      %s73 = sphi 0, %s75
      %s76 = sphi 0, %s73
      %s77 = sphi 0, %s76
      %s93 = sphi 0, %s77
    $region4: #{tpu_custom_call.1} parent=1 // loop_header_branch
      %14 = sbr.rel (%p12) target = $region8
    $region5: #{tpu_custom_call.1} parent=1 // loop_body
      %s16 = ssub.s32 %s11, 1
      %s17 = ssub.s32 %s11, 2
      %s18 = sadd.s32 %s11, 1
      %s19 = ssub.s32 %s11, %s18
      %p20 = scmp.eq.s32.totalorder %s19, 0
      %s22 = sadd.s32 %s21, 1
      %s23 = scalar_select %p20, %s21, %s22
      %p26 = pneg %p20
      %p27 = scmp.eq.s32.totalorder %s11, 1
      %p28 = por %p26, %p27
      %p29 = scmp.ne.s32.totalorder %s21, %s24
      %p30 = scmp.eq.s32.totalorder %s11, 0
      %p31 = por %p29, %p30
      %p32 = scmp.ne.s32.totalorder %s21, %s24
      %p33 = scmp.eq.s32.totalorder %s16, 1
      %p34 = por %p32, %p33
      %p35 = scmp.ne.s32.totalorder %s24, %s25
      %p36 = scmp.eq.s32.totalorder %s16, 0
      %p37 = por %p35, %p36
      %p38 = scmp.ne.s32.totalorder %s24, %s25
      %p39 = scmp.eq.s32.totalorder %s17, 1
      %p40 = por %p38, %p39
      %p42 = scmp.ne.s32.totalorder %s25, %s41
      %p43 = scmp.eq.s32.totalorder %s17, 0
      %p44 = por %p42, %p43
      %s45 = ssub.s32 %s11, %s18
      %p46 = scmp.eq.s32.totalorder %s45, 0
      %s48 = sadd.s32 %s47, 1
      %s49 = scalar_select %p46, %s47, %s48
      %p52 = pneg %p46
      %p53 = scmp.eq.s32.totalorder %s11, 1
      %p54 = por %p52, %p53
      %p55 = scmp.ne.s32.totalorder %s47, %s50
      %p56 = scmp.eq.s32.totalorder %s11, 0
      %p57 = por %p55, %p56
      %p58 = scmp.ne.s32.totalorder %s47, %s50
      %p59 = scmp.eq.s32.totalorder %s16, 1
      %p60 = por %p58, %p59
      %p61 = scmp.ne.s32.totalorder %s50, %s51
      %p62 = scmp.eq.s32.totalorder %s16, 0
      %p63 = por %p61, %p62
      %p64 = scmp.ne.s32.totalorder %s50, %s51
      %p65 = scmp.eq.s32.totalorder %s17, 1
      %p66 = por %p64, %p65
      %p68 = scmp.ne.s32.totalorder %s51, %s67
      %p69 = scmp.eq.s32.totalorder %s17, 0
      %p70 = por %p68, %p69
      %s71 = ssub.s32 %s11, %s18
      %p72 = scmp.eq.s32.totalorder %s71, 0
      %s74 = sadd.s32 %s73, 1
      %s75 = scalar_select %p72, %s73, %s74
      %p78 = pneg %p72
      %p79 = scmp.eq.s32.totalorder %s11, 1
      %p80 = por %p78, %p79
      %p81 = scmp.ne.s32.totalorder %s73, %s76
      %p82 = scmp.eq.s32.totalorder %s11, 0
      %p83 = por %p81, %p82
      %p84 = scmp.ne.s32.totalorder %s73, %s76
      %p85 = scmp.eq.s32.totalorder %s16, 1
      %p86 = por %p84, %p85
      %p87 = scmp.ne.s32.totalorder %s76, %s77
      %p88 = scmp.eq.s32.totalorder %s16, 0
      %p89 = por %p87, %p88
      %p90 = scmp.ne.s32.totalorder %s76, %s77
      %p91 = scmp.eq.s32.totalorder %s17, 1
      %p92 = por %p90, %p91
      %p94 = scmp.ne.s32.totalorder %s77, %s93
      %p95 = scmp.eq.s32.totalorder %s17, 0
      %p96 = por %p94, %p95
      %p97 = scmp.le.s32.totalorder 1, %s11
      %p98 = scmp.lt.s32.totalorder %s11, 3
      %p99 = pnand %p97, %p98
      %p100 = pneg %p99
      // Predicated region
      $region9: #{tpu_custom_call.1} parent=5 // pred_check
        _
      $region10: #{tpu_custom_call.1} parent=5 // pred_check_branch
        %102 = sbr.rel (%p99) target = $region12
      $region11: #{tpu_custom_call.1} parent=5 // pred_region
        %s103 = ssub.s32 %s11, 1
      $region12: #{tpu_custom_call.1} parent=5 // pred_fallthru
        _
      %p104 = scmp.lt.s32.totalorder %s11, 2
      // Predicated region
      $region13: #{tpu_custom_call.1} parent=5 // pred_check
        %p105 = pneg %p104
      $region14: #{tpu_custom_call.1} parent=5 // pred_check_branch
        %107 = sbr.rel (%p105) target = $region16
      $region15: #{tpu_custom_call.1} parent=5 // pred_region
        // Predicated region
        $region17: #{tpu_custom_call.1} parent=15 // pred_check
          %p108 = pneg %p31
        $region18: #{tpu_custom_call.1} parent=15 // pred_check_branch
          %110 = sbr.rel (%p108) target = $region20
        $region19: #{tpu_custom_call.1} parent=15 // pred_region
          %p111 = scmp.lt.s32.totalorder %s11, 1
          %s112 = scalar_select %p111, %s11, 1
          %s113 = smul.addr %s112, 8
          %s114 = scalar_lea.vmem %s0, %s113
        $region20: #{tpu_custom_call.1} parent=15 // pred_fallthru
          _
        // Predicated region
        $region21: #{tpu_custom_call.1} parent=15 // pred_check
          %p115 = pneg %p57
        $region22: #{tpu_custom_call.1} parent=15 // pred_check_branch
          %117 = sbr.rel (%p115) target = $region24
        $region23: #{tpu_custom_call.1} parent=15 // pred_region
          %p118 = scmp.lt.s32.totalorder %s11, 1
          %s119 = scalar_select %p118, %s11, 1
          %s120 = smul.addr %s119, 8
          %s121 = scalar_lea.vmem %s1, %s120
        $region24: #{tpu_custom_call.1} parent=15 // pred_fallthru
          _
      $region16: #{tpu_custom_call.1} parent=5 // pred_fallthru
        _
      %p122 = scmp.le.s32.totalorder 1, %s11
      %p123 = scmp.lt.s32.totalorder %s11, 3
      %p124 = pnand %p122, %p123
      %p125 = pneg %p124
      // Predicated region
      $region25: #{tpu_custom_call.1} parent=5 // pred_check
        _
      $region26: #{tpu_custom_call.1} parent=5 // pred_check_branch
        %127 = sbr.rel (%p124) target = $region28
      $region27: #{tpu_custom_call.1} parent=5 // pred_region
        %s128 = ssub.s32 %s11, 1
        %p129 = scmp.lt.s32.totalorder %s16, 1
        %s130 = scalar_select %p129, %s16, 1
        %s131 = smul.addr %s130, 8
        %s132 = scalar_lea.vmem %s0, %s131
        %p133 = pneg %p37
        %p134 = pneg %p34
        %p135 = scmp.lt.s32.totalorder %s16, 1
        %s136 = scalar_select %p135, %s16, 1
        %s137 = smul.addr %s136, 8
        %s138 = scalar_lea.vmem %s1, %s137
        %p139 = pneg %p63
        %p140 = pneg %p60
        %p141 = pneg %p89
        %p142 = pneg %p86
        %s143 = sand.u32 %s76, 1
        %s144 = scalar_lea.sflag [#allocation3], %s143
        %s145 = sand.u32 %s76, 1
        %s146 = smul.addr %s145, 8
        %s147 = scalar_lea.vmem [#allocation2], %s146
        %p148 = scmp.lt.s32.totalorder %s16, 1
        %s149 = scalar_select %p148, %s16, 1
        %s150 = smul.addr %s149, 8
        %s151 = scalar_lea.vmem %s0, %s150
        %p152 = scmp.lt.s32.totalorder %s16, 1
        %s153 = scalar_select %p152, %s16, 1
        %s154 = smul.addr %s153, 8
        %s155 = scalar_lea.vmem %s1, %s154
        %v156 = vld [vmem:[%s155] sm:$0xff]
        %v157 = vld [vmem:[%s151] sm:$0xff]
        %v158 = vlaneseq
        %v159 = vand.u32 %v158, 127
        %vm160 = vcmask 130048
        %v161 = vsel %vm160, %v156, -inf
        %162 = vmax.xlane.f32.xlu0 %v161
        %v163 = vpop.xlane.xlu0 %162
        %v164 = vsub.f32 %v156, %v163
        %v165 = vmul.f32 %v164, 1.442695
        %v166 = vpow.pop %v165
        %v167 = vsel %vm160, %v166, 0.0
        %168 = vadd.xlane.f32.xlu0 %v167
        %v169 = vpop.xlane.xlu0 %168
        %v170 = vlog2.pop %v169
        %v171 = vmul.f32 %v170, 0.6931472
        %v172 = vadd.f32 %v163, %v171
        %173 = vset.pattern.permute.xlu0 0
        %174 = vperm.xlu0 %173, %v157
        %v175 = vpop.permute.xlu0 %174
        %vm176 = vcmp.eq.s32.totalorder %v159, %v175
        %v177 = vsel %vm176, 0.9, 0.006666667
        %v178 = vmul.f32 %v156, %v177
        %v179 = vsel %vm160, %v178, 0.0
        %180 = vadd.xlane.f32.xlu0 %v179
        %v181 = vpop.xlane.xlu0 %180
        %v182 = vsub.f32 %v181, %v172
        %v183 = vsub.f32 -0.595888, %v182
        %v184 = vrot.slane %v183, 4
        %v185 = vadd.f32 %v183, %v184
        %v186 = vrot.slane %v185, 2
        %v187 = vadd.f32 %v185, %v186
        %v188 = vrot.slane %v187, 1
        %v189 = vadd.f32 %v187, %v188
        %190 = vst [vmem:[%s147] sm:$0xff] %v189
        %s191 = sand.u32 %s76, 1
        %s192 = scalar_lea.sflag [#allocation3], %s191
        %s193 = sand.u32 %s76, 1
        %s194 = smul.addr %s193, 8
        %s195 = scalar_lea.vmem [#allocation2], %s194
        // Predicated region
        $region29: #{tpu_custom_call.1} parent=27 // pred_check
          %p196 = pneg %p86
        $region30: #{tpu_custom_call.1} parent=27 // pred_check_branch
          %198 = sbr.rel (%p196) target = $region32
        $region31: #{tpu_custom_call.1} parent=27 // pred_region
          %s200 = ssub.s32 128, 128
          %201 = vsyncadd %s192, %s200
          %s202 = smul.addr %s16, 128
          %s203 = scalar_lea.hbm %s2, %s202
          %s205 = sshll.u32 %s195, 4
          %s206 = int_to_ptr.vmem [resolvable:$true] %s205
          %208 = dma.vmem_to_hbm [thread:$0]  %s206, 128, %s203, %s192
        $region32: #{tpu_custom_call.1} parent=27 // pred_fallthru
          _
      $region28: #{tpu_custom_call.1} parent=5 // pred_fallthru
        _
      %p209 = scmp.le.s32.totalorder 2, %s11
      // Predicated region
      $region33: #{tpu_custom_call.1} parent=5 // pred_check
        %p210 = pneg %p209
      $region34: #{tpu_custom_call.1} parent=5 // pred_check_branch
        %212 = sbr.rel (%p210) target = $region36
      $region35: #{tpu_custom_call.1} parent=5 // pred_region
        %s213 = ssub.s32 %s11, 2
        // Predicated region
        $region37: #{tpu_custom_call.1} parent=35 // pred_check
          %p214 = pneg %p92
        $region38: #{tpu_custom_call.1} parent=35 // pred_check_branch
          %216 = sbr.rel (%p214) target = $region40
        $region39: #{tpu_custom_call.1} parent=35 // pred_region
          %s217 = sand.u32 %s77, 1
          %s218 = scalar_lea.sflag [#allocation3], %s217
          %s219 = sand.u32 %s77, 1
          %s220 = smul.addr %s219, 8
          %s221 = scalar_lea.vmem [#allocation2], %s220
          %222 = dma.done %s218, 128
        $region40: #{tpu_custom_call.1} parent=35 // pred_fallthru
          _
      $region36: #{tpu_custom_call.1} parent=5 // pred_fallthru
        _
    $region6: #{tpu_custom_call.1} parent=1 // loop_footer
      %s15 = sadd.s32 1, %s11
    $region7: #{tpu_custom_call.1} parent=1 // loop_footer_branch
      %10 = sbr.rel target = $region3
    $region8: #{tpu_custom_call.1} parent=1 // loop_exit
      _
    %223 = vsyncpa [#allocation3], 1
    %s224 = scalar_lea.sflag [#allocation3], 1
    %225 = vsyncpa %s224, 1

</llo_original>
